<compile_context>
chip_gen: v6e
topology: v6e:2x2x1
jax: 0.10.0
libtpu: 0.0.40
codegen_flags: <defaults>
</compile_context>

<pallas_src>
import numpy as np
import jax
import jax.numpy as jnp
from jax.experimental import pallas as pl
from jax.experimental.pallas import tpu as pltpu

IN_FEATURES = 2
HIDDEN = 5
NUM_CLASSES = 4
BN_EPS = 1e-5

# ---- parameter slab layout: one [SLAB_ROWS, 128] f32 VMEM tile -------------
ROW_W1 = 0      # w1^T : [IN_FEATURES, HIDDEN]
ROW_W2 = 8      # w2^T : [HIDDEN, HIDDEN]
ROW_W3 = 16     # w3^T : [HIDDEN, HIDDEN]
ROW_W4 = 24     # w4^T : [HIDDEN, HIDDEN]
ROW_W5 = 32     # w5^T : [HIDDEN, NUM_CLASSES]
ROW_B = 40      # b1..b5 at rows 40..44
ROW_G = 48      # g1..g4 at rows 48..51
ROW_BE = 52     # be1..be4 at rows 52..55
SLAB_ROWS = 56
SLAB_LANES = 128


def _linear_vpu(x, w, b):
    """x:[B,K] @ w:[K,N] + b:[1,N] via unrolled broadcast-FMA (K,N tiny; no MXU)."""
    k_dim = w.shape[0]
    acc = x[:, 0:1] * w[0:1, :] + b
    for k in range(1, k_dim):
        acc = acc + x[:, k:k + 1] * w[k:k + 1, :]
    return acc


def _bn_relu(h, gamma, beta, inv_b):
    """Training-mode BatchNorm1d (batch mean, biased variance) + ReLU.
    One-pass stats: the two sublane reductions are independent."""
    s1 = jnp.sum(h, axis=0, keepdims=True)
    s2 = jnp.sum(h * h, axis=0, keepdims=True)
    mean = s1 * inv_b
    var = jnp.maximum(s2 * inv_b - mean * mean, 0.0)
    y = (h - mean) * jax.lax.rsqrt(var + BN_EPS)
    return jnp.maximum(y * gamma + beta, 0.0)


def linear5_kernel(x_ref, p_ref, out_ref):
    x = x_ref[...]                      # [B, IN_FEATURES]
    inv_b = 1.0 / x.shape[0]            # static Python float

    def w(row, k, n):                   # static ref slice -> [k, n] weight block
        return p_ref[row:row + k, 0:n]

    def vec(row, n):                    # static ref slice -> [1, n] vector param
        return p_ref[row:row + 1, 0:n]

    h = _linear_vpu(x, w(ROW_W1, IN_FEATURES, HIDDEN), vec(ROW_B + 0, HIDDEN))
    h = _bn_relu(h, vec(ROW_G + 0, HIDDEN), vec(ROW_BE + 0, HIDDEN), inv_b)

    h = _linear_vpu(h, w(ROW_W2, HIDDEN, HIDDEN), vec(ROW_B + 1, HIDDEN))
    h = _bn_relu(h, vec(ROW_G + 1, HIDDEN), vec(ROW_BE + 1, HIDDEN), inv_b)

    h = _linear_vpu(h, w(ROW_W3, HIDDEN, HIDDEN), vec(ROW_B + 2, HIDDEN))
    h = _bn_relu(h, vec(ROW_G + 2, HIDDEN), vec(ROW_BE + 2, HIDDEN), inv_b)

    h = _linear_vpu(h, w(ROW_W4, HIDDEN, HIDDEN), vec(ROW_B + 3, HIDDEN))
    h = _bn_relu(h, vec(ROW_G + 3, HIDDEN), vec(ROW_BE + 3, HIDDEN), inv_b)

    logits = _linear_vpu(h, w(ROW_W5, HIDDEN, NUM_CLASSES),
                         vec(ROW_B + 4, NUM_CLASSES))
    # stabilized log_softmax over classes (lane dim)
    z = logits - jnp.max(logits, axis=1, keepdims=True)
    lse = jnp.log(jnp.sum(jnp.exp(z), axis=1, keepdims=True))
    out_ref[...] = (z - lse).astype(out_ref.dtype)


def init_params(key):
    """PyTorch-like init: Linear uniform(+/-1/sqrt(fan_in)); BN gamma=1, beta=0."""
    params = {}
    dims = [(HIDDEN, IN_FEATURES), (HIDDEN, HIDDEN), (HIDDEN, HIDDEN),
            (HIDDEN, HIDDEN), (NUM_CLASSES, HIDDEN)]
    keys = jax.random.split(key, 2 * len(dims))
    for i, (out_f, in_f) in enumerate(dims, start=1):
        bound = 1.0 / (in_f ** 0.5)
        params[f"w{i}"] = jax.random.uniform(
            keys[2 * (i - 1)], (out_f, in_f), jnp.float32, -bound, bound)
        params[f"b{i}"] = jax.random.uniform(
            keys[2 * (i - 1) + 1], (out_f,), jnp.float32, -bound, bound)
    for i in range(1, 5):
        params[f"g{i}"] = jnp.ones((HIDDEN,), jnp.float32)
        params[f"be{i}"] = jnp.zeros((HIDDEN,), jnp.float32)
    return params


def pack_params(params):
    """Fuse all parameters into one [SLAB_ROWS, 128] f32 slab (single DMA).
    Built host-side with numpy -> one device transfer.  Weights are
    pre-transposed to (in_features, out_features)."""
    slab = np.zeros((SLAB_ROWS, SLAB_LANES), np.float32)
    w_rows = [ROW_W1, ROW_W2, ROW_W3, ROW_W4, ROW_W5]
    for i, row in enumerate(w_rows, start=1):
        wt = np.asarray(params[f"w{i}"]).T           # (in, out)
        slab[row:row + wt.shape[0], 0:wt.shape[1]] = wt
        b = np.asarray(params[f"b{i}"])
        slab[ROW_B + i - 1, 0:b.shape[0]] = b
    for i in range(1, 5):
        slab[ROW_G + i - 1, 0:HIDDEN] = np.asarray(params[f"g{i}"])
        slab[ROW_BE + i - 1, 0:HIDDEN] = np.asarray(params[f"be{i}"])
    return jnp.asarray(slab)


@jax.jit
def linear5_forward(x, slab):
    B = x.shape[0]
    vmem = pl.BlockSpec(memory_space=pltpu.MemorySpace.VMEM)
    return pl.pallas_call(
        linear5_kernel,
        out_shape=jax.ShapeDtypeStruct((B, NUM_CLASSES), jnp.float32),
        in_specs=[vmem, vmem],
        out_specs=vmem,
    )(x, slab)


def linear5_reference(x, params):
    """Pure-JAX reference (training-mode BN), for correctness checking."""
    h = x
    for i in range(1, 5):
        h = h @ params[f"w{i}"].T + params[f"b{i}"]
        mean = jnp.mean(h, axis=0, keepdims=True)
        var = jnp.mean((h - mean) ** 2, axis=0, keepdims=True)
        h = (h - mean) / jnp.sqrt(var + BN_EPS)
        h = jnp.maximum(h * params[f"g{i}"] + params[f"be{i}"], 0.0)
    logits = h @ params["w5"].T + params["b5"]
    return jax.nn.log_softmax(logits, axis=1)


if __name__ == "__main__":
    key = jax.random.PRNGKey(0)
    k_x, k_p = jax.random.split(key)
    batch = 8
    x = jax.random.normal(k_x, (batch, IN_FEATURES), jnp.float32)
    params = init_params(k_p)
    slab = pack_params(params)

    out = linear5_forward(x, slab)
    out = jax.block_until_ready(out)

    assert out.shape == (batch, NUM_CLASSES)
    ref = linear5_reference(x, params)
    assert jnp.allclose(out, ref, atol=1e-4, rtol=1e-4), (out, ref)
    row_sums = jnp.sum(jnp.exp(out), axis=1)
    assert jnp.allclose(row_sums, 1.0, atol=1e-4), row_sums
    print("KERNEL_OK")
</pallas_src>

<mosaic_0001>
module attributes {stable_mosaic.version = 11 : i64} {
  func.func @linear5_kernel(%arg0: memref<8x2xf32, #tpu.memory_space<vmem>>, %arg1: memref<56x128xf32, #tpu.memory_space<vmem>>, %arg2: memref<8x4xf32, #tpu.memory_space<vmem>>) attributes {dimension_semantics = [], scalar_prefetch = 0 : i64, scratch_operands = 0 : i64, tpu.core_type = #tpu.core_type<tc>} {
    %c0 = arith.constant 0 : index
    %c0_0 = arith.constant 0 : index
    %0 = vector.load %arg0[%c0, %c0_0] : memref<8x2xf32, #tpu.memory_space<vmem>>, vector<8x2xf32>
    %c0_1 = arith.constant 0 : index
    %c0_2 = arith.constant 0 : index
    %1 = vector.load %arg1[%c0_1, %c0_2] : memref<56x128xf32, #tpu.memory_space<vmem>>, vector<2x5xf32>
    %c40 = arith.constant 40 : index
    %c0_3 = arith.constant 0 : index
    %2 = vector.load %arg1[%c40, %c0_3] : memref<56x128xf32, #tpu.memory_space<vmem>>, vector<1x5xf32>
    %3 = vector.extract_strided_slice %0 {offsets = [0, 0], sizes = [8, 1], strides = [1, 1]} : vector<8x2xf32> to vector<8x1xf32>
    %4 = vector.extract_strided_slice %1 {offsets = [0, 0], sizes = [1, 5], strides = [1, 1]} : vector<2x5xf32> to vector<1x5xf32>
    %5 = vector.broadcast %3 : vector<8x1xf32> to vector<8x5xf32>
    %6 = vector.broadcast %4 : vector<1x5xf32> to vector<8x5xf32>
    %7 = arith.mulf %5, %6 : vector<8x5xf32>
    %8 = vector.broadcast %2 : vector<1x5xf32> to vector<8x5xf32>
    %9 = arith.addf %7, %8 : vector<8x5xf32>
    %10 = vector.extract_strided_slice %0 {offsets = [0, 1], sizes = [8, 1], strides = [1, 1]} : vector<8x2xf32> to vector<8x1xf32>
    %11 = vector.extract_strided_slice %1 {offsets = [1, 0], sizes = [1, 5], strides = [1, 1]} : vector<2x5xf32> to vector<1x5xf32>
    %12 = vector.broadcast %10 : vector<8x1xf32> to vector<8x5xf32>
    %13 = vector.broadcast %11 : vector<1x5xf32> to vector<8x5xf32>
    %14 = arith.mulf %12, %13 : vector<8x5xf32>
    %15 = arith.addf %9, %14 : vector<8x5xf32>
    %c48 = arith.constant 48 : index
    %c0_4 = arith.constant 0 : index
    %16 = vector.load %arg1[%c48, %c0_4] : memref<56x128xf32, #tpu.memory_space<vmem>>, vector<1x5xf32>
    %c52 = arith.constant 52 : index
    %c0_5 = arith.constant 0 : index
    %17 = vector.load %arg1[%c52, %c0_5] : memref<56x128xf32, #tpu.memory_space<vmem>>, vector<1x5xf32>
    %cst = arith.constant dense<0.000000e+00> : vector<5xf32>
    %18 = vector.multi_reduction <add>, %15, %cst [0] : vector<8x5xf32> to vector<5xf32>
    %19 = vector.shape_cast %18 : vector<5xf32> to vector<1x5xf32>
    %20 = arith.mulf %15, %15 : vector<8x5xf32>
    %cst_6 = arith.constant dense<0.000000e+00> : vector<5xf32>
    %21 = vector.multi_reduction <add>, %20, %cst_6 [0] : vector<8x5xf32> to vector<5xf32>
    %22 = vector.shape_cast %21 : vector<5xf32> to vector<1x5xf32>
    %cst_7 = arith.constant 1.250000e-01 : f32
    %23 = vector.broadcast %cst_7 : f32 to vector<1x5xf32>
    %24 = arith.mulf %19, %23 : vector<1x5xf32>
    %cst_8 = arith.constant 1.250000e-01 : f32
    %25 = vector.broadcast %cst_8 : f32 to vector<1x5xf32>
    %26 = arith.mulf %22, %25 : vector<1x5xf32>
    %27 = arith.mulf %24, %24 : vector<1x5xf32>
    %28 = arith.subf %26, %27 : vector<1x5xf32>
    %cst_9 = arith.constant 0.000000e+00 : f32
    %29 = vector.broadcast %cst_9 : f32 to vector<1x5xf32>
    %30 = arith.maximumf %28, %29 : vector<1x5xf32>
    %31 = vector.broadcast %24 : vector<1x5xf32> to vector<8x5xf32>
    %32 = arith.subf %15, %31 : vector<8x5xf32>
    %cst_10 = arith.constant 9.99999974E-6 : f32
    %33 = vector.broadcast %cst_10 : f32 to vector<1x5xf32>
    %34 = arith.addf %30, %33 : vector<1x5xf32>
    %35 = math.rsqrt %34 : vector<1x5xf32>
    %36 = vector.broadcast %35 : vector<1x5xf32> to vector<8x5xf32>
    %37 = arith.mulf %32, %36 : vector<8x5xf32>
    %38 = vector.broadcast %16 : vector<1x5xf32> to vector<8x5xf32>
    %39 = arith.mulf %37, %38 : vector<8x5xf32>
    %40 = vector.broadcast %17 : vector<1x5xf32> to vector<8x5xf32>
    %41 = arith.addf %39, %40 : vector<8x5xf32>
    %cst_11 = arith.constant 0.000000e+00 : f32
    %42 = vector.broadcast %cst_11 : f32 to vector<8x5xf32>
    %43 = arith.maximumf %41, %42 : vector<8x5xf32>
    %c8 = arith.constant 8 : index
    %c0_12 = arith.constant 0 : index
    %44 = vector.load %arg1[%c8, %c0_12] : memref<56x128xf32, #tpu.memory_space<vmem>>, vector<5x5xf32>
    %c41 = arith.constant 41 : index
    %c0_13 = arith.constant 0 : index
    %45 = vector.load %arg1[%c41, %c0_13] : memref<56x128xf32, #tpu.memory_space<vmem>>, vector<1x5xf32>
    %46 = vector.extract_strided_slice %43 {offsets = [0, 0], sizes = [8, 1], strides = [1, 1]} : vector<8x5xf32> to vector<8x1xf32>
    %47 = vector.extract_strided_slice %44 {offsets = [0, 0], sizes = [1, 5], strides = [1, 1]} : vector<5x5xf32> to vector<1x5xf32>
    %48 = vector.broadcast %46 : vector<8x1xf32> to vector<8x5xf32>
    %49 = vector.broadcast %47 : vector<1x5xf32> to vector<8x5xf32>
    %50 = arith.mulf %48, %49 : vector<8x5xf32>
    %51 = vector.broadcast %45 : vector<1x5xf32> to vector<8x5xf32>
    %52 = arith.addf %50, %51 : vector<8x5xf32>
    %53 = vector.extract_strided_slice %43 {offsets = [0, 1], sizes = [8, 1], strides = [1, 1]} : vector<8x5xf32> to vector<8x1xf32>
    %54 = vector.extract_strided_slice %44 {offsets = [1, 0], sizes = [1, 5], strides = [1, 1]} : vector<5x5xf32> to vector<1x5xf32>
    %55 = vector.broadcast %53 : vector<8x1xf32> to vector<8x5xf32>
    %56 = vector.broadcast %54 : vector<1x5xf32> to vector<8x5xf32>
    %57 = arith.mulf %55, %56 : vector<8x5xf32>
    %58 = arith.addf %52, %57 : vector<8x5xf32>
    %59 = vector.extract_strided_slice %43 {offsets = [0, 2], sizes = [8, 1], strides = [1, 1]} : vector<8x5xf32> to vector<8x1xf32>
    %60 = vector.extract_strided_slice %44 {offsets = [2, 0], sizes = [1, 5], strides = [1, 1]} : vector<5x5xf32> to vector<1x5xf32>
    %61 = vector.broadcast %59 : vector<8x1xf32> to vector<8x5xf32>
    %62 = vector.broadcast %60 : vector<1x5xf32> to vector<8x5xf32>
    %63 = arith.mulf %61, %62 : vector<8x5xf32>
    %64 = arith.addf %58, %63 : vector<8x5xf32>
    %65 = vector.extract_strided_slice %43 {offsets = [0, 3], sizes = [8, 1], strides = [1, 1]} : vector<8x5xf32> to vector<8x1xf32>
    %66 = vector.extract_strided_slice %44 {offsets = [3, 0], sizes = [1, 5], strides = [1, 1]} : vector<5x5xf32> to vector<1x5xf32>
    %67 = vector.broadcast %65 : vector<8x1xf32> to vector<8x5xf32>
    %68 = vector.broadcast %66 : vector<1x5xf32> to vector<8x5xf32>
    %69 = arith.mulf %67, %68 : vector<8x5xf32>
    %70 = arith.addf %64, %69 : vector<8x5xf32>
    %71 = vector.extract_strided_slice %43 {offsets = [0, 4], sizes = [8, 1], strides = [1, 1]} : vector<8x5xf32> to vector<8x1xf32>
    %72 = vector.extract_strided_slice %44 {offsets = [4, 0], sizes = [1, 5], strides = [1, 1]} : vector<5x5xf32> to vector<1x5xf32>
    %73 = vector.broadcast %71 : vector<8x1xf32> to vector<8x5xf32>
    %74 = vector.broadcast %72 : vector<1x5xf32> to vector<8x5xf32>
    %75 = arith.mulf %73, %74 : vector<8x5xf32>
    %76 = arith.addf %70, %75 : vector<8x5xf32>
    %c49 = arith.constant 49 : index
    %c0_14 = arith.constant 0 : index
    %77 = vector.load %arg1[%c49, %c0_14] : memref<56x128xf32, #tpu.memory_space<vmem>>, vector<1x5xf32>
    %c53 = arith.constant 53 : index
    %c0_15 = arith.constant 0 : index
    %78 = vector.load %arg1[%c53, %c0_15] : memref<56x128xf32, #tpu.memory_space<vmem>>, vector<1x5xf32>
    %cst_16 = arith.constant dense<0.000000e+00> : vector<5xf32>
    %79 = vector.multi_reduction <add>, %76, %cst_16 [0] : vector<8x5xf32> to vector<5xf32>
    %80 = vector.shape_cast %79 : vector<5xf32> to vector<1x5xf32>
    %81 = arith.mulf %76, %76 : vector<8x5xf32>
    %cst_17 = arith.constant dense<0.000000e+00> : vector<5xf32>
    %82 = vector.multi_reduction <add>, %81, %cst_17 [0] : vector<8x5xf32> to vector<5xf32>
    %83 = vector.shape_cast %82 : vector<5xf32> to vector<1x5xf32>
    %cst_18 = arith.constant 1.250000e-01 : f32
    %84 = vector.broadcast %cst_18 : f32 to vector<1x5xf32>
    %85 = arith.mulf %80, %84 : vector<1x5xf32>
    %cst_19 = arith.constant 1.250000e-01 : f32
    %86 = vector.broadcast %cst_19 : f32 to vector<1x5xf32>
    %87 = arith.mulf %83, %86 : vector<1x5xf32>
    %88 = arith.mulf %85, %85 : vector<1x5xf32>
    %89 = arith.subf %87, %88 : vector<1x5xf32>
    %cst_20 = arith.constant 0.000000e+00 : f32
    %90 = vector.broadcast %cst_20 : f32 to vector<1x5xf32>
    %91 = arith.maximumf %89, %90 : vector<1x5xf32>
    %92 = vector.broadcast %85 : vector<1x5xf32> to vector<8x5xf32>
    %93 = arith.subf %76, %92 : vector<8x5xf32>
    %cst_21 = arith.constant 9.99999974E-6 : f32
    %94 = vector.broadcast %cst_21 : f32 to vector<1x5xf32>
    %95 = arith.addf %91, %94 : vector<1x5xf32>
    %96 = math.rsqrt %95 : vector<1x5xf32>
    %97 = vector.broadcast %96 : vector<1x5xf32> to vector<8x5xf32>
    %98 = arith.mulf %93, %97 : vector<8x5xf32>
    %99 = vector.broadcast %77 : vector<1x5xf32> to vector<8x5xf32>
    %100 = arith.mulf %98, %99 : vector<8x5xf32>
    %101 = vector.broadcast %78 : vector<1x5xf32> to vector<8x5xf32>
    %102 = arith.addf %100, %101 : vector<8x5xf32>
    %cst_22 = arith.constant 0.000000e+00 : f32
    %103 = vector.broadcast %cst_22 : f32 to vector<8x5xf32>
    %104 = arith.maximumf %102, %103 : vector<8x5xf32>
    %c16 = arith.constant 16 : index
    %c0_23 = arith.constant 0 : index
    %105 = vector.load %arg1[%c16, %c0_23] : memref<56x128xf32, #tpu.memory_space<vmem>>, vector<5x5xf32>
    %c42 = arith.constant 42 : index
    %c0_24 = arith.constant 0 : index
    %106 = vector.load %arg1[%c42, %c0_24] : memref<56x128xf32, #tpu.memory_space<vmem>>, vector<1x5xf32>
    %107 = vector.extract_strided_slice %104 {offsets = [0, 0], sizes = [8, 1], strides = [1, 1]} : vector<8x5xf32> to vector<8x1xf32>
    %108 = vector.extract_strided_slice %105 {offsets = [0, 0], sizes = [1, 5], strides = [1, 1]} : vector<5x5xf32> to vector<1x5xf32>
    %109 = vector.broadcast %107 : vector<8x1xf32> to vector<8x5xf32>
    %110 = vector.broadcast %108 : vector<1x5xf32> to vector<8x5xf32>
    %111 = arith.mulf %109, %110 : vector<8x5xf32>
    %112 = vector.broadcast %106 : vector<1x5xf32> to vector<8x5xf32>
    %113 = arith.addf %111, %112 : vector<8x5xf32>
    %114 = vector.extract_strided_slice %104 {offsets = [0, 1], sizes = [8, 1], strides = [1, 1]} : vector<8x5xf32> to vector<8x1xf32>
    %115 = vector.extract_strided_slice %105 {offsets = [1, 0], sizes = [1, 5], strides = [1, 1]} : vector<5x5xf32> to vector<1x5xf32>
    %116 = vector.broadcast %114 : vector<8x1xf32> to vector<8x5xf32>
    %117 = vector.broadcast %115 : vector<1x5xf32> to vector<8x5xf32>
    %118 = arith.mulf %116, %117 : vector<8x5xf32>
    %119 = arith.addf %113, %118 : vector<8x5xf32>
    %120 = vector.extract_strided_slice %104 {offsets = [0, 2], sizes = [8, 1], strides = [1, 1]} : vector<8x5xf32> to vector<8x1xf32>
    %121 = vector.extract_strided_slice %105 {offsets = [2, 0], sizes = [1, 5], strides = [1, 1]} : vector<5x5xf32> to vector<1x5xf32>
    %122 = vector.broadcast %120 : vector<8x1xf32> to vector<8x5xf32>
    %123 = vector.broadcast %121 : vector<1x5xf32> to vector<8x5xf32>
    %124 = arith.mulf %122, %123 : vector<8x5xf32>
    %125 = arith.addf %119, %124 : vector<8x5xf32>
    %126 = vector.extract_strided_slice %104 {offsets = [0, 3], sizes = [8, 1], strides = [1, 1]} : vector<8x5xf32> to vector<8x1xf32>
    %127 = vector.extract_strided_slice %105 {offsets = [3, 0], sizes = [1, 5], strides = [1, 1]} : vector<5x5xf32> to vector<1x5xf32>
    %128 = vector.broadcast %126 : vector<8x1xf32> to vector<8x5xf32>
    %129 = vector.broadcast %127 : vector<1x5xf32> to vector<8x5xf32>
    %130 = arith.mulf %128, %129 : vector<8x5xf32>
    %131 = arith.addf %125, %130 : vector<8x5xf32>
    %132 = vector.extract_strided_slice %104 {offsets = [0, 4], sizes = [8, 1], strides = [1, 1]} : vector<8x5xf32> to vector<8x1xf32>
    %133 = vector.extract_strided_slice %105 {offsets = [4, 0], sizes = [1, 5], strides = [1, 1]} : vector<5x5xf32> to vector<1x5xf32>
    %134 = vector.broadcast %132 : vector<8x1xf32> to vector<8x5xf32>
    %135 = vector.broadcast %133 : vector<1x5xf32> to vector<8x5xf32>
    %136 = arith.mulf %134, %135 : vector<8x5xf32>
    %137 = arith.addf %131, %136 : vector<8x5xf32>
    %c50 = arith.constant 50 : index
    %c0_25 = arith.constant 0 : index
    %138 = vector.load %arg1[%c50, %c0_25] : memref<56x128xf32, #tpu.memory_space<vmem>>, vector<1x5xf32>
    %c54 = arith.constant 54 : index
    %c0_26 = arith.constant 0 : index
    %139 = vector.load %arg1[%c54, %c0_26] : memref<56x128xf32, #tpu.memory_space<vmem>>, vector<1x5xf32>
    %cst_27 = arith.constant dense<0.000000e+00> : vector<5xf32>
    %140 = vector.multi_reduction <add>, %137, %cst_27 [0] : vector<8x5xf32> to vector<5xf32>
    %141 = vector.shape_cast %140 : vector<5xf32> to vector<1x5xf32>
    %142 = arith.mulf %137, %137 : vector<8x5xf32>
    %cst_28 = arith.constant dense<0.000000e+00> : vector<5xf32>
    %143 = vector.multi_reduction <add>, %142, %cst_28 [0] : vector<8x5xf32> to vector<5xf32>
    %144 = vector.shape_cast %143 : vector<5xf32> to vector<1x5xf32>
    %cst_29 = arith.constant 1.250000e-01 : f32
    %145 = vector.broadcast %cst_29 : f32 to vector<1x5xf32>
    %146 = arith.mulf %141, %145 : vector<1x5xf32>
    %cst_30 = arith.constant 1.250000e-01 : f32
    %147 = vector.broadcast %cst_30 : f32 to vector<1x5xf32>
    %148 = arith.mulf %144, %147 : vector<1x5xf32>
    %149 = arith.mulf %146, %146 : vector<1x5xf32>
    %150 = arith.subf %148, %149 : vector<1x5xf32>
    %cst_31 = arith.constant 0.000000e+00 : f32
    %151 = vector.broadcast %cst_31 : f32 to vector<1x5xf32>
    %152 = arith.maximumf %150, %151 : vector<1x5xf32>
    %153 = vector.broadcast %146 : vector<1x5xf32> to vector<8x5xf32>
    %154 = arith.subf %137, %153 : vector<8x5xf32>
    %cst_32 = arith.constant 9.99999974E-6 : f32
    %155 = vector.broadcast %cst_32 : f32 to vector<1x5xf32>
    %156 = arith.addf %152, %155 : vector<1x5xf32>
    %157 = math.rsqrt %156 : vector<1x5xf32>
    %158 = vector.broadcast %157 : vector<1x5xf32> to vector<8x5xf32>
    %159 = arith.mulf %154, %158 : vector<8x5xf32>
    %160 = vector.broadcast %138 : vector<1x5xf32> to vector<8x5xf32>
    %161 = arith.mulf %159, %160 : vector<8x5xf32>
    %162 = vector.broadcast %139 : vector<1x5xf32> to vector<8x5xf32>
    %163 = arith.addf %161, %162 : vector<8x5xf32>
    %cst_33 = arith.constant 0.000000e+00 : f32
    %164 = vector.broadcast %cst_33 : f32 to vector<8x5xf32>
    %165 = arith.maximumf %163, %164 : vector<8x5xf32>
    %c24 = arith.constant 24 : index
    %c0_34 = arith.constant 0 : index
    %166 = vector.load %arg1[%c24, %c0_34] : memref<56x128xf32, #tpu.memory_space<vmem>>, vector<5x5xf32>
    %c43 = arith.constant 43 : index
    %c0_35 = arith.constant 0 : index
    %167 = vector.load %arg1[%c43, %c0_35] : memref<56x128xf32, #tpu.memory_space<vmem>>, vector<1x5xf32>
    %168 = vector.extract_strided_slice %165 {offsets = [0, 0], sizes = [8, 1], strides = [1, 1]} : vector<8x5xf32> to vector<8x1xf32>
    %169 = vector.extract_strided_slice %166 {offsets = [0, 0], sizes = [1, 5], strides = [1, 1]} : vector<5x5xf32> to vector<1x5xf32>
    %170 = vector.broadcast %168 : vector<8x1xf32> to vector<8x5xf32>
    %171 = vector.broadcast %169 : vector<1x5xf32> to vector<8x5xf32>
    %172 = arith.mulf %170, %171 : vector<8x5xf32>
    %173 = vector.broadcast %167 : vector<1x5xf32> to vector<8x5xf32>
    %174 = arith.addf %172, %173 : vector<8x5xf32>
    %175 = vector.extract_strided_slice %165 {offsets = [0, 1], sizes = [8, 1], strides = [1, 1]} : vector<8x5xf32> to vector<8x1xf32>
    %176 = vector.extract_strided_slice %166 {offsets = [1, 0], sizes = [1, 5], strides = [1, 1]} : vector<5x5xf32> to vector<1x5xf32>
    %177 = vector.broadcast %175 : vector<8x1xf32> to vector<8x5xf32>
    %178 = vector.broadcast %176 : vector<1x5xf32> to vector<8x5xf32>
    %179 = arith.mulf %177, %178 : vector<8x5xf32>
    %180 = arith.addf %174, %179 : vector<8x5xf32>
    %181 = vector.extract_strided_slice %165 {offsets = [0, 2], sizes = [8, 1], strides = [1, 1]} : vector<8x5xf32> to vector<8x1xf32>
    %182 = vector.extract_strided_slice %166 {offsets = [2, 0], sizes = [1, 5], strides = [1, 1]} : vector<5x5xf32> to vector<1x5xf32>
    %183 = vector.broadcast %181 : vector<8x1xf32> to vector<8x5xf32>
    %184 = vector.broadcast %182 : vector<1x5xf32> to vector<8x5xf32>
    %185 = arith.mulf %183, %184 : vector<8x5xf32>
    %186 = arith.addf %180, %185 : vector<8x5xf32>
    %187 = vector.extract_strided_slice %165 {offsets = [0, 3], sizes = [8, 1], strides = [1, 1]} : vector<8x5xf32> to vector<8x1xf32>
    %188 = vector.extract_strided_slice %166 {offsets = [3, 0], sizes = [1, 5], strides = [1, 1]} : vector<5x5xf32> to vector<1x5xf32>
    %189 = vector.broadcast %187 : vector<8x1xf32> to vector<8x5xf32>
    %190 = vector.broadcast %188 : vector<1x5xf32> to vector<8x5xf32>
    %191 = arith.mulf %189, %190 : vector<8x5xf32>
    %192 = arith.addf %186, %191 : vector<8x5xf32>
    %193 = vector.extract_strided_slice %165 {offsets = [0, 4], sizes = [8, 1], strides = [1, 1]} : vector<8x5xf32> to vector<8x1xf32>
    %194 = vector.extract_strided_slice %166 {offsets = [4, 0], sizes = [1, 5], strides = [1, 1]} : vector<5x5xf32> to vector<1x5xf32>
    %195 = vector.broadcast %193 : vector<8x1xf32> to vector<8x5xf32>
    %196 = vector.broadcast %194 : vector<1x5xf32> to vector<8x5xf32>
    %197 = arith.mulf %195, %196 : vector<8x5xf32>
    %198 = arith.addf %192, %197 : vector<8x5xf32>
    %c51 = arith.constant 51 : index
    %c0_36 = arith.constant 0 : index
    %199 = vector.load %arg1[%c51, %c0_36] : memref<56x128xf32, #tpu.memory_space<vmem>>, vector<1x5xf32>
    %c55 = arith.constant 55 : index
    %c0_37 = arith.constant 0 : index
    %200 = vector.load %arg1[%c55, %c0_37] : memref<56x128xf32, #tpu.memory_space<vmem>>, vector<1x5xf32>
    %cst_38 = arith.constant dense<0.000000e+00> : vector<5xf32>
    %201 = vector.multi_reduction <add>, %198, %cst_38 [0] : vector<8x5xf32> to vector<5xf32>
    %202 = vector.shape_cast %201 : vector<5xf32> to vector<1x5xf32>
    %203 = arith.mulf %198, %198 : vector<8x5xf32>
    %cst_39 = arith.constant dense<0.000000e+00> : vector<5xf32>
    %204 = vector.multi_reduction <add>, %203, %cst_39 [0] : vector<8x5xf32> to vector<5xf32>
    %205 = vector.shape_cast %204 : vector<5xf32> to vector<1x5xf32>
    %cst_40 = arith.constant 1.250000e-01 : f32
    %206 = vector.broadcast %cst_40 : f32 to vector<1x5xf32>
    %207 = arith.mulf %202, %206 : vector<1x5xf32>
    %cst_41 = arith.constant 1.250000e-01 : f32
    %208 = vector.broadcast %cst_41 : f32 to vector<1x5xf32>
    %209 = arith.mulf %205, %208 : vector<1x5xf32>
    %210 = arith.mulf %207, %207 : vector<1x5xf32>
    %211 = arith.subf %209, %210 : vector<1x5xf32>
    %cst_42 = arith.constant 0.000000e+00 : f32
    %212 = vector.broadcast %cst_42 : f32 to vector<1x5xf32>
    %213 = arith.maximumf %211, %212 : vector<1x5xf32>
    %214 = vector.broadcast %207 : vector<1x5xf32> to vector<8x5xf32>
    %215 = arith.subf %198, %214 : vector<8x5xf32>
    %cst_43 = arith.constant 9.99999974E-6 : f32
    %216 = vector.broadcast %cst_43 : f32 to vector<1x5xf32>
    %217 = arith.addf %213, %216 : vector<1x5xf32>
    %218 = math.rsqrt %217 : vector<1x5xf32>
    %219 = vector.broadcast %218 : vector<1x5xf32> to vector<8x5xf32>
    %220 = arith.mulf %215, %219 : vector<8x5xf32>
    %221 = vector.broadcast %199 : vector<1x5xf32> to vector<8x5xf32>
    %222 = arith.mulf %220, %221 : vector<8x5xf32>
    %223 = vector.broadcast %200 : vector<1x5xf32> to vector<8x5xf32>
    %224 = arith.addf %222, %223 : vector<8x5xf32>
    %cst_44 = arith.constant 0.000000e+00 : f32
    %225 = vector.broadcast %cst_44 : f32 to vector<8x5xf32>
    %226 = arith.maximumf %224, %225 : vector<8x5xf32>
    %c32 = arith.constant 32 : index
    %c0_45 = arith.constant 0 : index
    %227 = vector.load %arg1[%c32, %c0_45] : memref<56x128xf32, #tpu.memory_space<vmem>>, vector<5x4xf32>
    %c44 = arith.constant 44 : index
    %c0_46 = arith.constant 0 : index
    %228 = vector.load %arg1[%c44, %c0_46] : memref<56x128xf32, #tpu.memory_space<vmem>>, vector<1x4xf32>
    %229 = vector.extract_strided_slice %226 {offsets = [0, 0], sizes = [8, 1], strides = [1, 1]} : vector<8x5xf32> to vector<8x1xf32>
    %230 = vector.extract_strided_slice %227 {offsets = [0, 0], sizes = [1, 4], strides = [1, 1]} : vector<5x4xf32> to vector<1x4xf32>
    %231 = vector.broadcast %229 : vector<8x1xf32> to vector<8x4xf32>
    %232 = vector.broadcast %230 : vector<1x4xf32> to vector<8x4xf32>
    %233 = arith.mulf %231, %232 : vector<8x4xf32>
    %234 = vector.broadcast %228 : vector<1x4xf32> to vector<8x4xf32>
    %235 = arith.addf %233, %234 : vector<8x4xf32>
    %236 = vector.extract_strided_slice %226 {offsets = [0, 1], sizes = [8, 1], strides = [1, 1]} : vector<8x5xf32> to vector<8x1xf32>
    %237 = vector.extract_strided_slice %227 {offsets = [1, 0], sizes = [1, 4], strides = [1, 1]} : vector<5x4xf32> to vector<1x4xf32>
    %238 = vector.broadcast %236 : vector<8x1xf32> to vector<8x4xf32>
    %239 = vector.broadcast %237 : vector<1x4xf32> to vector<8x4xf32>
    %240 = arith.mulf %238, %239 : vector<8x4xf32>
    %241 = arith.addf %235, %240 : vector<8x4xf32>
    %242 = vector.extract_strided_slice %226 {offsets = [0, 2], sizes = [8, 1], strides = [1, 1]} : vector<8x5xf32> to vector<8x1xf32>
    %243 = vector.extract_strided_slice %227 {offsets = [2, 0], sizes = [1, 4], strides = [1, 1]} : vector<5x4xf32> to vector<1x4xf32>
    %244 = vector.broadcast %242 : vector<8x1xf32> to vector<8x4xf32>
    %245 = vector.broadcast %243 : vector<1x4xf32> to vector<8x4xf32>
    %246 = arith.mulf %244, %245 : vector<8x4xf32>
    %247 = arith.addf %241, %246 : vector<8x4xf32>
    %248 = vector.extract_strided_slice %226 {offsets = [0, 3], sizes = [8, 1], strides = [1, 1]} : vector<8x5xf32> to vector<8x1xf32>
    %249 = vector.extract_strided_slice %227 {offsets = [3, 0], sizes = [1, 4], strides = [1, 1]} : vector<5x4xf32> to vector<1x4xf32>
    %250 = vector.broadcast %248 : vector<8x1xf32> to vector<8x4xf32>
    %251 = vector.broadcast %249 : vector<1x4xf32> to vector<8x4xf32>
    %252 = arith.mulf %250, %251 : vector<8x4xf32>
    %253 = arith.addf %247, %252 : vector<8x4xf32>
    %254 = vector.extract_strided_slice %226 {offsets = [0, 4], sizes = [8, 1], strides = [1, 1]} : vector<8x5xf32> to vector<8x1xf32>
    %255 = vector.extract_strided_slice %227 {offsets = [4, 0], sizes = [1, 4], strides = [1, 1]} : vector<5x4xf32> to vector<1x4xf32>
    %256 = vector.broadcast %254 : vector<8x1xf32> to vector<8x4xf32>
    %257 = vector.broadcast %255 : vector<1x4xf32> to vector<8x4xf32>
    %258 = arith.mulf %256, %257 : vector<8x4xf32>
    %259 = arith.addf %253, %258 : vector<8x4xf32>
    %cst_47 = arith.constant dense<0xFF800000> : vector<8xf32>
    %260 = vector.multi_reduction <maximumf>, %259, %cst_47 [1] : vector<8x4xf32> to vector<8xf32>
    %261 = vector.shape_cast %260 : vector<8xf32> to vector<8x1xf32>
    %262 = vector.broadcast %261 : vector<8x1xf32> to vector<8x4xf32>
    %263 = arith.subf %259, %262 : vector<8x4xf32>
    %264 = math.exp %263 : vector<8x4xf32>
    %cst_48 = arith.constant dense<0.000000e+00> : vector<8xf32>
    %265 = vector.multi_reduction <add>, %264, %cst_48 [1] : vector<8x4xf32> to vector<8xf32>
    %266 = vector.shape_cast %265 : vector<8xf32> to vector<8x1xf32>
    %267 = math.log %266 : vector<8x1xf32>
    %268 = vector.broadcast %267 : vector<8x1xf32> to vector<8x4xf32>
    %269 = arith.subf %263, %268 : vector<8x4xf32>
    %c0_49 = arith.constant 0 : index
    %c0_50 = arith.constant 0 : index
    %270 = vector.load %arg2[%c0_49, %c0_50] : memref<8x4xf32, #tpu.memory_space<vmem>>, vector<8x4xf32>
    tpu.vector_store %arg2[%c0_49, %c0_50], %269 {strides = array<i32>} : memref<8x4xf32, #tpu.memory_space<vmem>>, vector<8x4xf32>,
    return
  }
}

</mosaic_0001>

<llo_original>
// kernel: linear5_forward.1
$region0: #{linear5_forward.1}
  #allocation0 [shape = 'u32[]', space=smem, size = 0x4, offset = 0x4, fixed_abs, tag = 'smem constant byte address 0x4 - core index']
  #allocation1 [shape = 'u32[144,128]{1,0:T(1,128)}', space=vmem, size = 0x12000, scoped, tag = 'internal scratch']
  %s0 = inlined_call_operand.vmem [shape: f32[8,2], index: 0, kind: input, shape index: {}]
  %s1 = inlined_call_operand.hbm [shape: f32[56,128], index: 1, kind: input, shape index: {}]
  %s2 = inlined_call_operand.vmem [shape: f32[8,4], index: 2, kind: output, shape index: {}]
  %s3 = sld [smem:[#allocation0]]
  $region22: #{linear5_forward.1} parent=0
    _
  %s5 = ssub.s32 1, %s3
  %s6 = scalar_select 0, %s5, %s3
  $region1: #{linear5_forward.1} parent=0
    #allocation2 [shape = 'u8[28672]{0}', space=vmem, size = 0x7000, scoped, tag = 'input window, operand 1, single buffered']
    #allocation3 [shape = 's32[1]{0}', space=sflag, size = 0x4, scoped, tag = 'scoped memory for linear5_forward.1']
    %7 = vsyncpa [#allocation3], 0
    // Predicated region
    $region2: #{linear5_forward.1} parent=1 // pred_check
      _
    $region3: #{linear5_forward.1} parent=1 // pred_check_branch
      %9 = sbr.rel (0) target = $region5
    $region4: #{linear5_forward.1} parent=1 // pred_region
      _
    $region5: #{linear5_forward.1} parent=1 // pred_fallthru
      _
    // Predicated region
    $region6: #{linear5_forward.1} parent=1 // pred_check
      _
    $region7: #{linear5_forward.1} parent=1 // pred_check_branch
      %11 = sbr.rel (0) target = $region9
    $region8: #{linear5_forward.1} parent=1 // pred_region
      %s13 = ssub.s32 896, 896
      %14 = vsyncadd [#allocation3], %s13
      %s15 = sshll.u32 [#allocation2], 4
      %s16 = int_to_ptr.vmem [resolvable:$true] %s15
      %21 = dma.hbm_to_vmem [thread:$0]  %s1, 896, %s16, [#allocation3], 128, 128, 8
    $region9: #{linear5_forward.1} parent=1 // pred_fallthru
      _
    // Predicated region
    $region10: #{linear5_forward.1} parent=1 // pred_check
      _
    $region11: #{linear5_forward.1} parent=1 // pred_check_branch
      %23 = sbr.rel (0) target = $region13
    $region12: #{linear5_forward.1} parent=1 // pred_region
      %24 = dma.done [#allocation3], 896
    $region13: #{linear5_forward.1} parent=1 // pred_fallthru
      _
    %v25 = vld [vmem:[%s0] sm:$0xff]
    %v26 = vld [vmem:[#allocation2] sm:$0x3]
    %v27 = vld [vmem:[#allocation2 + $0x28] sm:$0x1]
    %29 = vset.pattern.permute.xlu0 0
    %30 = vperm.xlu0 %29, %v25
    %v31 = vpop.permute.xlu0 %30
    %v33 = vlaneseq
    %v34 = vshrl.u32 %v33, 7
    %v35 = vsub.s32 0, %v34
    %v36 = vrot.slane %v26, %v35
    %v37 = vmul.f32 %v31, %v36
    %v38 = vlaneseq
    %v39 = vshrl.u32 %v38, 7
    %v40 = vsub.s32 0, %v39
    %v41 = vrot.slane %v27, %v40
    %v42 = vadd.f32 %v37, %v41
    %43 = vset.pattern.permute.xlu0 1
    %44 = vperm.xlu0 %43, %v25
    %v45 = vpop.permute.xlu0 %44
    %v47 = vlaneseq
    %v48 = vshrl.u32 %v47, 7
    %v49 = vsub.s32 1, %v48
    %v50 = vrot.slane %v26, %v49
    %v51 = vmul.f32 %v45, %v50
    %v52 = vadd.f32 %v42, %v51
    %v53 = vld [vmem:[#allocation2 + $0x30] sm:$0x1]
    %v54 = vld [vmem:[#allocation2 + $0x34] sm:$0x1]
    %vm55 = vcmask 39936
    %v56 = vsel %vm55, %v52, 0.0
    %v57 = vrot.slane %v56, 4
    %v58 = vadd.f32 %v56, %v57
    %v59 = vrot.slane %v58, 2
    %v60 = vadd.f32 %v58, %v59
    %v61 = vrot.slane %v60, 1
    %v62 = vadd.f32 %v60, %v61
    %v63 = vmul.f32 %v52, %v52
    %v64 = vsel %vm55, %v63, 0.0
    %v65 = vrot.slane %v64, 4
    %v66 = vadd.f32 %v64, %v65
    %v67 = vrot.slane %v66, 2
    %v68 = vadd.f32 %v66, %v67
    %v69 = vrot.slane %v68, 1
    %v70 = vadd.f32 %v68, %v69
    %v71 = vmul.f32 %v62, 0.125
    %v72 = vmul.f32 %v70, 0.125
    %v73 = vmul.f32 %v71, %v71
    %v74 = vsub.f32 %v72, %v73
    %v75 = vmax.f32 %v74, 0.0
    %v76 = vsub.f32 %v52, %v71
    %v77 = vadd.f32 %v75, 1e-05
    %v78 = vrsqrt.pop %v77
    %v79 = vmul.f32 %v76, %v78
    %v80 = vlaneseq
    %v81 = vshrl.u32 %v80, 7
    %v82 = vsub.s32 0, %v81
    %v83 = vrot.slane %v53, %v82
    %v84 = vmul.f32 %v79, %v83
    %v85 = vlaneseq
    %v86 = vshrl.u32 %v85, 7
    %v87 = vsub.s32 0, %v86
    %v88 = vrot.slane %v54, %v87
    %v89 = vadd.f32 %v84, %v88
    %v90 = vmax.f32 %v89, 0.0
    %v91 = vld [vmem:[#allocation2 + $0x8] sm:$0x1f]
    %v92 = vld [vmem:[#allocation2 + $0x29] sm:$0x1]
    %94 = vset.pattern.permute.xlu0 0
    %95 = vperm.xlu0 %94, %v90
    %v96 = vpop.permute.xlu0 %95
    %v98 = vlaneseq
    %v99 = vshrl.u32 %v98, 7
    %v100 = vsub.s32 0, %v99
    %v101 = vrot.slane %v91, %v100
    %v102 = vmul.f32 %v96, %v101
    %v103 = vlaneseq
    %v104 = vshrl.u32 %v103, 7
    %v105 = vsub.s32 0, %v104
    %v106 = vrot.slane %v92, %v105
    %v107 = vadd.f32 %v102, %v106
    %108 = vset.pattern.permute.xlu0 1
    %109 = vperm.xlu0 %108, %v90
    %v110 = vpop.permute.xlu0 %109
    %v112 = vlaneseq
    %v113 = vshrl.u32 %v112, 7
    %v114 = vsub.s32 1, %v113
    %v115 = vrot.slane %v91, %v114
    %v116 = vmul.f32 %v110, %v115
    %v117 = vadd.f32 %v107, %v116
    %118 = vset.pattern.permute.xlu0 2
    %119 = vperm.xlu0 %118, %v90
    %v120 = vpop.permute.xlu0 %119
    %v122 = vlaneseq
    %v123 = vshrl.u32 %v122, 7
    %v124 = vsub.s32 2, %v123
    %v125 = vrot.slane %v91, %v124
    %v126 = vmul.f32 %v120, %v125
    %v127 = vadd.f32 %v117, %v126
    %128 = vset.pattern.permute.xlu0 3
    %129 = vperm.xlu0 %128, %v90
    %v130 = vpop.permute.xlu0 %129
    %v132 = vlaneseq
    %v133 = vshrl.u32 %v132, 7
    %v134 = vsub.s32 3, %v133
    %v135 = vrot.slane %v91, %v134
    %v136 = vmul.f32 %v130, %v135
    %v137 = vadd.f32 %v127, %v136
    %138 = vset.pattern.permute.xlu0 4
    %139 = vperm.xlu0 %138, %v90
    %v140 = vpop.permute.xlu0 %139
    %v142 = vlaneseq
    %v143 = vshrl.u32 %v142, 7
    %v144 = vsub.s32 4, %v143
    %v145 = vrot.slane %v91, %v144
    %v146 = vmul.f32 %v140, %v145
    %v147 = vadd.f32 %v137, %v146
    %v148 = vld [vmem:[#allocation2 + $0x31] sm:$0x1]
    %v149 = vld [vmem:[#allocation2 + $0x35] sm:$0x1]
    %v150 = vsel %vm55, %v147, 0.0
    %v151 = vrot.slane %v150, 4
    %v152 = vadd.f32 %v150, %v151
    %v153 = vrot.slane %v152, 2
    %v154 = vadd.f32 %v152, %v153
    %v155 = vrot.slane %v154, 1
    %v156 = vadd.f32 %v154, %v155
    %v157 = vmul.f32 %v147, %v147
    %v158 = vsel %vm55, %v157, 0.0
    %v159 = vrot.slane %v158, 4
    %v160 = vadd.f32 %v158, %v159
    %v161 = vrot.slane %v160, 2
    %v162 = vadd.f32 %v160, %v161
    %v163 = vrot.slane %v162, 1
    %v164 = vadd.f32 %v162, %v163
    %v165 = vmul.f32 %v156, 0.125
    %v166 = vmul.f32 %v164, 0.125
    %v167 = vmul.f32 %v165, %v165
    %v168 = vsub.f32 %v166, %v167
    %v169 = vmax.f32 %v168, 0.0
    %v170 = vsub.f32 %v147, %v165
    %v171 = vadd.f32 %v169, 1e-05
    %v172 = vrsqrt.pop %v171
    %v173 = vmul.f32 %v170, %v172
    %v174 = vlaneseq
    %v175 = vshrl.u32 %v174, 7
    %v176 = vsub.s32 0, %v175
    %v177 = vrot.slane %v148, %v176
    %v178 = vmul.f32 %v173, %v177
    %v179 = vlaneseq
    %v180 = vshrl.u32 %v179, 7
    %v181 = vsub.s32 0, %v180
    %v182 = vrot.slane %v149, %v181
    %v183 = vadd.f32 %v178, %v182
    %v184 = vmax.f32 %v183, 0.0
    %v185 = vld [vmem:[#allocation2 + $0x10] sm:$0x1f]
    %v186 = vld [vmem:[#allocation2 + $0x2a] sm:$0x1]
    %188 = vset.pattern.permute.xlu0 0
    %189 = vperm.xlu0 %188, %v184
    %v190 = vpop.permute.xlu0 %189
    %v192 = vlaneseq
    %v193 = vshrl.u32 %v192, 7
    %v194 = vsub.s32 0, %v193
    %v195 = vrot.slane %v185, %v194
    %v196 = vmul.f32 %v190, %v195
    %v197 = vlaneseq
    %v198 = vshrl.u32 %v197, 7
    %v199 = vsub.s32 0, %v198
    %v200 = vrot.slane %v186, %v199
    %v201 = vadd.f32 %v196, %v200
    %202 = vset.pattern.permute.xlu0 1
    %203 = vperm.xlu0 %202, %v184
    %v204 = vpop.permute.xlu0 %203
    %v206 = vlaneseq
    %v207 = vshrl.u32 %v206, 7
    %v208 = vsub.s32 1, %v207
    %v209 = vrot.slane %v185, %v208
    %v210 = vmul.f32 %v204, %v209
    %v211 = vadd.f32 %v201, %v210
    %212 = vset.pattern.permute.xlu0 2
    %213 = vperm.xlu0 %212, %v184
    %v214 = vpop.permute.xlu0 %213
    %v216 = vlaneseq
    %v217 = vshrl.u32 %v216, 7
    %v218 = vsub.s32 2, %v217
    %v219 = vrot.slane %v185, %v218
    %v220 = vmul.f32 %v214, %v219
    %v221 = vadd.f32 %v211, %v220
    %222 = vset.pattern.permute.xlu0 3
    %223 = vperm.xlu0 %222, %v184
    %v224 = vpop.permute.xlu0 %223
    %v226 = vlaneseq
    %v227 = vshrl.u32 %v226, 7
    %v228 = vsub.s32 3, %v227
    %v229 = vrot.slane %v185, %v228
    %v230 = vmul.f32 %v224, %v229
    %v231 = vadd.f32 %v221, %v230
    %232 = vset.pattern.permute.xlu0 4
    %233 = vperm.xlu0 %232, %v184
    %v234 = vpop.permute.xlu0 %233
    %v236 = vlaneseq
    %v237 = vshrl.u32 %v236, 7
    %v238 = vsub.s32 4, %v237
    %v239 = vrot.slane %v185, %v238
    %v240 = vmul.f32 %v234, %v239
    %v241 = vadd.f32 %v231, %v240
    %v242 = vld [vmem:[#allocation2 + $0x32] sm:$0x1]
    %v243 = vld [vmem:[#allocation2 + $0x36] sm:$0x1]
    %v244 = vsel %vm55, %v241, 0.0
    %v245 = vrot.slane %v244, 4
    %v246 = vadd.f32 %v244, %v245
    %v247 = vrot.slane %v246, 2
    %v248 = vadd.f32 %v246, %v247
    %v249 = vrot.slane %v248, 1
    %v250 = vadd.f32 %v248, %v249
    %v251 = vmul.f32 %v241, %v241
    %v252 = vsel %vm55, %v251, 0.0
    %v253 = vrot.slane %v252, 4
    %v254 = vadd.f32 %v252, %v253
    %v255 = vrot.slane %v254, 2
    %v256 = vadd.f32 %v254, %v255
    %v257 = vrot.slane %v256, 1
    %v258 = vadd.f32 %v256, %v257
    %v259 = vmul.f32 %v250, 0.125
    %v260 = vmul.f32 %v258, 0.125
    %v261 = vmul.f32 %v259, %v259
    %v262 = vsub.f32 %v260, %v261
    %v263 = vmax.f32 %v262, 0.0
    %v264 = vsub.f32 %v241, %v259
    %v265 = vadd.f32 %v263, 1e-05
    %v266 = vrsqrt.pop %v265
    %v267 = vmul.f32 %v264, %v266
    %v268 = vlaneseq
    %v269 = vshrl.u32 %v268, 7
    %v270 = vsub.s32 0, %v269
    %v271 = vrot.slane %v242, %v270
    %v272 = vmul.f32 %v267, %v271
    %v273 = vlaneseq
    %v274 = vshrl.u32 %v273, 7
    %v275 = vsub.s32 0, %v274
    %v276 = vrot.slane %v243, %v275
    %v277 = vadd.f32 %v272, %v276
    %v278 = vmax.f32 %v277, 0.0
    %v279 = vld [vmem:[#allocation2 + $0x18] sm:$0x1f]
    %v280 = vld [vmem:[#allocation2 + $0x2b] sm:$0x1]
    %282 = vset.pattern.permute.xlu0 0
    %283 = vperm.xlu0 %282, %v278
    %v284 = vpop.permute.xlu0 %283
    %v286 = vlaneseq
    %v287 = vshrl.u32 %v286, 7
    %v288 = vsub.s32 0, %v287
    %v289 = vrot.slane %v279, %v288
    %v290 = vmul.f32 %v284, %v289
    %v291 = vlaneseq
    %v292 = vshrl.u32 %v291, 7
    %v293 = vsub.s32 0, %v292
    %v294 = vrot.slane %v280, %v293
    %v295 = vadd.f32 %v290, %v294
    %296 = vset.pattern.permute.xlu0 1
    %297 = vperm.xlu0 %296, %v278
    %v298 = vpop.permute.xlu0 %297
    %v300 = vlaneseq
    %v301 = vshrl.u32 %v300, 7
    %v302 = vsub.s32 1, %v301
    %v303 = vrot.slane %v279, %v302
    %v304 = vmul.f32 %v298, %v303
    %v305 = vadd.f32 %v295, %v304
    %306 = vset.pattern.permute.xlu0 2
    %307 = vperm.xlu0 %306, %v278
    %v308 = vpop.permute.xlu0 %307
    %v310 = vlaneseq
    %v311 = vshrl.u32 %v310, 7
    %v312 = vsub.s32 2, %v311
    %v313 = vrot.slane %v279, %v312
    %v314 = vmul.f32 %v308, %v313
    %v315 = vadd.f32 %v305, %v314
    %316 = vset.pattern.permute.xlu0 3
    %317 = vperm.xlu0 %316, %v278
    %v318 = vpop.permute.xlu0 %317
    %v320 = vlaneseq
    %v321 = vshrl.u32 %v320, 7
    %v322 = vsub.s32 3, %v321
    %v323 = vrot.slane %v279, %v322
    %v324 = vmul.f32 %v318, %v323
    %v325 = vadd.f32 %v315, %v324
    %326 = vset.pattern.permute.xlu0 4
    %327 = vperm.xlu0 %326, %v278
    %v328 = vpop.permute.xlu0 %327
    %v330 = vlaneseq
    %v331 = vshrl.u32 %v330, 7
    %v332 = vsub.s32 4, %v331
    %v333 = vrot.slane %v279, %v332
    %v334 = vmul.f32 %v328, %v333
    %v335 = vadd.f32 %v325, %v334
    %v336 = vld [vmem:[#allocation2 + $0x33] sm:$0x1]
    %v337 = vld [vmem:[#allocation2 + $0x37] sm:$0x1]
    %v338 = vsel %vm55, %v335, 0.0
    %v339 = vrot.slane %v338, 4
    %v340 = vadd.f32 %v338, %v339
    %v341 = vrot.slane %v340, 2
    %v342 = vadd.f32 %v340, %v341
    %v343 = vrot.slane %v342, 1
    %v344 = vadd.f32 %v342, %v343
    %v345 = vmul.f32 %v335, %v335
    %v346 = vsel %vm55, %v345, 0.0
    %v347 = vrot.slane %v346, 4
    %v348 = vadd.f32 %v346, %v347
    %v349 = vrot.slane %v348, 2
    %v350 = vadd.f32 %v348, %v349
    %v351 = vrot.slane %v350, 1
    %v352 = vadd.f32 %v350, %v351
    %v353 = vmul.f32 %v344, 0.125
    %v354 = vmul.f32 %v352, 0.125
    %v355 = vmul.f32 %v353, %v353
    %v356 = vsub.f32 %v354, %v355
    %v357 = vmax.f32 %v356, 0.0
    %v358 = vsub.f32 %v335, %v353
    %v359 = vadd.f32 %v357, 1e-05
    %v360 = vrsqrt.pop %v359
    %v361 = vmul.f32 %v358, %v360
    %v362 = vlaneseq
    %v363 = vshrl.u32 %v362, 7
    %v364 = vsub.s32 0, %v363
    %v365 = vrot.slane %v336, %v364
    %v366 = vmul.f32 %v361, %v365
    %v367 = vlaneseq
    %v368 = vshrl.u32 %v367, 7
    %v369 = vsub.s32 0, %v368
    %v370 = vrot.slane %v337, %v369
    %v371 = vadd.f32 %v366, %v370
    %v372 = vmax.f32 %v371, 0.0
    %v373 = vld [vmem:[#allocation2 + $0x20] sm:$0x1f]
    %v374 = vld [vmem:[#allocation2 + $0x2c] sm:$0x1]
    %376 = vset.pattern.permute.xlu0 0
    %377 = vperm.xlu0 %376, %v372
    %v378 = vpop.permute.xlu0 %377
    %v380 = vlaneseq
    %v381 = vshrl.u32 %v380, 7
    %v382 = vsub.s32 0, %v381
    %v383 = vrot.slane %v373, %v382
    %v384 = vmul.f32 %v378, %v383
    %v385 = vlaneseq
    %v386 = vshrl.u32 %v385, 7
    %v387 = vsub.s32 0, %v386
    %v388 = vrot.slane %v374, %v387
    %v389 = vadd.f32 %v384, %v388
    %390 = vset.pattern.permute.xlu0 1
    %391 = vperm.xlu0 %390, %v372
    %v392 = vpop.permute.xlu0 %391
    %v394 = vlaneseq
    %v395 = vshrl.u32 %v394, 7
    %v396 = vsub.s32 1, %v395
    %v397 = vrot.slane %v373, %v396
    %v398 = vmul.f32 %v392, %v397
    %v399 = vadd.f32 %v389, %v398
    %400 = vset.pattern.permute.xlu0 2
    %401 = vperm.xlu0 %400, %v372
    %v402 = vpop.permute.xlu0 %401
    %v404 = vlaneseq
    %v405 = vshrl.u32 %v404, 7
    %v406 = vsub.s32 2, %v405
    %v407 = vrot.slane %v373, %v406
    %v408 = vmul.f32 %v402, %v407
    %v409 = vadd.f32 %v399, %v408
    %410 = vset.pattern.permute.xlu0 3
    %411 = vperm.xlu0 %410, %v372
    %v412 = vpop.permute.xlu0 %411
    %v414 = vlaneseq
    %v415 = vshrl.u32 %v414, 7
    %v416 = vsub.s32 3, %v415
    %v417 = vrot.slane %v373, %v416
    %v418 = vmul.f32 %v412, %v417
    %v419 = vadd.f32 %v409, %v418
    %420 = vset.pattern.permute.xlu0 4
    %421 = vperm.xlu0 %420, %v372
    %v422 = vpop.permute.xlu0 %421
    %v424 = vlaneseq
    %v425 = vshrl.u32 %v424, 7
    %v426 = vsub.s32 4, %v425
    %v427 = vrot.slane %v373, %v426
    %v428 = vmul.f32 %v422, %v427
    %v429 = vadd.f32 %v419, %v428
    %vm430 = vcmask 31744
    %v431 = vsel %vm430, %v429, -inf
    %432 = vmax.xlane.f32.xlu0 %v431
    %v433 = vpop.xlane.xlu0 %432
    %v434 = vsub.f32 %v429, %v433
    %v435 = vmul.f32 %v434, 1.442695
    %v436 = vpow.pop %v435
    %v437 = vsel %vm430, %v436, 0.0
    %438 = vadd.xlane.f32.xlu0 %v437
    %v439 = vpop.xlane.xlu0 %438
    %v440 = vlog2.pop %v439
    %v441 = vmul.f32 %v440, 0.6931472
    %v442 = vsub.f32 %v434, %v441
    %443 = vst.msk [vmem:[%s2] sm:$0xff] %vm430, %v442
    // Predicated region
    $region14: #{linear5_forward.1} parent=1 // pred_check
      _
    $region15: #{linear5_forward.1} parent=1 // pred_check_branch
      %445 = sbr.rel (0) target = $region17
    $region16: #{linear5_forward.1} parent=1 // pred_region
      _
    $region17: #{linear5_forward.1} parent=1 // pred_fallthru
      _
    // Predicated region
    $region18: #{linear5_forward.1} parent=1 // pred_check
      _
    $region19: #{linear5_forward.1} parent=1 // pred_check_branch
      %447 = sbr.rel (0) target = $region21
    $region20: #{linear5_forward.1} parent=1 // pred_region
      _
    $region21: #{linear5_forward.1} parent=1 // pred_fallthru
      _
    %448 = vsyncpa [#allocation3], 1

</llo_original>
